<compile_context>
chip_gen: v5e
topology: v5e:2x2
jax: 0.10.0
libtpu: 0.0.40
codegen_flags: <defaults>
</compile_context>

<pallas_src>
import jax
import jax.numpy as jnp
from jax import lax
from jax.experimental import pallas as pl
from jax.experimental.pallas import tpu as pltpu

INPUT_DIM = 1
HIDDEN_DIM = 50
OUTPUT_DIM = 1
H_PAD = 56          # hidden dim zero-padded to a sublane-aligned width (multiple of 8)
CHUNK = 256         # in-kernel lane sub-chunk width (multiple of 128)
N_MISC_COLS = 8     # packed slab columns: [w1, b1, b2, b3, b4, w5, b5_bcast, pad]


def mlp_kernel(x_ref, w_hid_ref, misc_ref, o_ref):
    # x_ref    : [1, tb]            lane-dense batch tile (batch on lanes)
    # w_hid_ref: [3, H_PAD, H_PAD]  hidden Linear weights (PyTorch [out,in] layout), zero-padded
    # misc_ref : [H_PAD, 8]         columns = [w1, b1, b2, b3, b4, w5, b5_bcast, 0]
    # o_ref    : [1, tb]            lane-dense output tile

    # Hoist all parameter slices out of the chunk loop (JAX does not CSE these).
    w1 = misc_ref[:, 0:1]                       # [H_PAD, 1]  layer-1 weight (in_dim = 1)
    b1 = misc_ref[:, 1:2]
    b2 = misc_ref[:, 2:3]
    b3 = misc_ref[:, 3:4]
    b4 = misc_ref[:, 4:5]
    w5 = misc_ref[:, 5:6]                       # [H_PAD, 1]  layer-5 weight (out_dim = 1)
    b5 = misc_ref[0:1, 6:7]                     # [1, 1]      layer-5 bias (scalar)
    w2 = w_hid_ref[0]
    w3 = w_hid_ref[1]
    w4 = w_hid_ref[2]
    mm_dtype = w2.dtype

    tb = x_ref.shape[1]
    num_chunks = tb // CHUNK

    def body(c, carry):
        start = pl.multiple_of(c * CHUNK, CHUNK)
        x = x_ref[:, pl.ds(start, CHUNK)]                       # [1, CHUNK]

        # Layer 1 (K=1): broadcast outer product on the VPU + tanh on the EUP (no MXU).
        h = jnp.tanh(w1 * x + b1)                               # [H_PAD, CHUNK]

        # Layers 2..4: feature-major matmuls on the MXU with f32 accumulation.
        h = jnp.tanh(jnp.dot(w2, h.astype(mm_dtype),
                             preferred_element_type=jnp.float32) + b2)
        h = jnp.tanh(jnp.dot(w3, h.astype(mm_dtype),
                             preferred_element_type=jnp.float32) + b3)
        h = jnp.tanh(jnp.dot(w4, h.astype(mm_dtype),
                             preferred_element_type=jnp.float32) + b4)

        # Layer 5 (out_dim=1): weighted sublane reduction (XLU) instead of an M=1 matmul.
        y = jnp.sum(h * w5, axis=0, keepdims=True) + b5         # [1, CHUNK]
        o_ref[:, pl.ds(start, CHUNK)] = y.astype(o_ref.dtype)
        return carry

    # unroll=2: adjacent chunks are independent, so the scheduler can overlap
    # chunk c's matmuls with chunk c+1's tanh / layer-1 VPU work.
    lax.fori_loop(0, num_chunks, body, 0, unroll=2)


def pack_params(params, mm_dtype=jnp.float32):
    """params: list of 5 (W, b) in PyTorch layout (W: [out, in], b: [out])."""
    (w1, b1), (w2, b2), (w3, b3), (w4, b4), (w5, b5) = params
    f32 = jnp.float32

    def pad_col(v):  # [HIDDEN_DIM] -> [H_PAD, 1]
        return jnp.zeros((H_PAD, 1), f32).at[: v.shape[0], 0].set(v.astype(f32))

    def pad_mat(w):  # [HIDDEN_DIM, HIDDEN_DIM] -> [H_PAD, H_PAD]
        return jnp.zeros((H_PAD, H_PAD), f32).at[: w.shape[0], : w.shape[1]].set(w.astype(f32))

    w_hid = jnp.stack([pad_mat(w2), pad_mat(w3), pad_mat(w4)]).astype(mm_dtype)  # [3,H_PAD,H_PAD]

    cols = [
        pad_col(w1[:, 0]),                                       # L1 weight column
        pad_col(b1), pad_col(b2), pad_col(b3), pad_col(b4),      # biases of L1..L4
        pad_col(w5[0, :]),                                       # L5 weight column
        jnp.full((H_PAD, 1), b5[0], dtype=f32),                  # L5 bias (scalar, broadcast)
        jnp.zeros((H_PAD, 1), f32),                              # pad to 8 columns
    ]
    misc = jnp.concatenate(cols, axis=1)                         # [H_PAD, 8]
    return w_hid, misc


def neural_network_forward(x, params, *, batch_tile=8192, mm_dtype=jnp.float32):
    """x: [N, INPUT_DIM]. params in PyTorch layout. Returns [N, OUTPUT_DIM]."""
    n = x.shape[0]
    w_hid, misc = pack_params(params, mm_dtype=mm_dtype)

    assert batch_tile % CHUNK == 0, "batch_tile must be a multiple of the in-kernel chunk"
    # Size tb so the grid has >= 2 steps whenever possible (both v7x TensorCores get
    # work), rounded to the chunk width; large batches cap at batch_tile.
    tb = min(batch_tile, max(CHUNK, pl.cdiv(pl.cdiv(n, 2), CHUNK) * CHUNK))
    grid = (pl.cdiv(n, tb),)

    # No host-side zero-pad: x is viewed as a (1, N) lane row; the ragged tail of the
    # last block is handled by Pallas boundary masking (garbage lanes are lane-local
    # and never written back past N).
    x_row = x.reshape(1, n).astype(jnp.float32)

    flops = 2 * n * (HIDDEN_DIM * INPUT_DIM
                     + 3 * HIDDEN_DIM * HIDDEN_DIM
                     + HIDDEN_DIM * OUTPUT_DIM)
    cost = pl.CostEstimate(
        flops=flops,
        transcendentals=4 * HIDDEN_DIM * n,
        bytes_accessed=8 * n + 4 * int(w_hid.size) + 4 * int(misc.size),
    )

    out_row = pl.pallas_call(
        mlp_kernel,
        out_shape=jax.ShapeDtypeStruct((1, n), x.dtype),
        grid_spec=pltpu.PrefetchScalarGridSpec(
            num_scalar_prefetch=0,
            grid=grid,
            in_specs=[
                pl.BlockSpec((1, tb), lambda i: (0, i)),          # x tile (lane-dense)
                pl.BlockSpec(w_hid.shape, lambda i: (0, 0, 0)),   # resident hidden weights
                pl.BlockSpec(misc.shape, lambda i: (0, 0)),       # resident bias/edge slab
            ],
            out_specs=pl.BlockSpec((1, tb), lambda i: (0, i)),    # output tile (lane-dense)
        ),
        compiler_params=pltpu.CompilerParams(
            dimension_semantics=("parallel",)),
        cost_estimate=cost,
    )(x_row, w_hid, misc)

    return out_row.reshape(n, OUTPUT_DIM).astype(x.dtype)


def xavier_uniform(key, fan_out, fan_in, dtype=jnp.float32):
    # Matches torch.nn.init.xavier_uniform_ (gain=1): U(-a, a), a = sqrt(6/(fan_in+fan_out))
    a = (6.0 / (fan_in + fan_out)) ** 0.5
    return jax.random.uniform(key, (fan_out, fan_in), dtype=dtype, minval=-a, maxval=a)


def init_params(key):
    dims = [INPUT_DIM, HIDDEN_DIM, HIDDEN_DIM, HIDDEN_DIM, HIDDEN_DIM, OUTPUT_DIM]
    keys = jax.random.split(key, len(dims) - 1)
    params = []
    for k, fi, fo in zip(keys, dims[:-1], dims[1:]):
        w = xavier_uniform(k, fo, fi)                 # PyTorch layout [out, in]
        b = jnp.zeros((fo,), jnp.float32)             # zeros_, like init_weights
        params.append((w, b))
    return params


def reference_forward(x, params):
    h = x
    for i, (w, b) in enumerate(params):
        h = h @ w.T + b
        if i < len(params) - 1:
            h = jnp.tanh(h)
    return h


if __name__ == "__main__":
    key = jax.random.PRNGKey(0)
    k_params, k_x = jax.random.split(key)

    params = init_params(k_params)

    batch = 520  # deliberately ragged: 2 grid steps of tb=512 (one full + one partial)
    x = jax.random.normal(k_x, (batch, INPUT_DIM), dtype=jnp.float32)

    out = neural_network_forward(x, params)
    out = jax.block_until_ready(out)

    ref = reference_forward(x, params)
    assert out.shape == (batch, OUTPUT_DIM)
    assert bool(jnp.allclose(out, ref, atol=3e-5, rtol=3e-5)), "mismatch vs pure-JAX reference"

    print("KERNEL_OK")
</pallas_src>

<mosaic_0001>
module attributes {stable_mosaic.version = 11 : i64} {
  func.func @mlp_kernel(%arg0: i32, %arg1: memref<1x512xf32, #tpu.memory_space<vmem>>, %arg2: memref<3x56x56xf32, #tpu.memory_space<vmem>>, %arg3: memref<56x8xf32, #tpu.memory_space<vmem>>, %arg4: memref<1x512xf32, #tpu.memory_space<vmem>>) attributes {dimension_semantics = [#tpu.dimension_semantics<parallel>], iteration_bounds = array<i64: 2>, scalar_prefetch = 0 : i64, scratch_operands = 0 : i64, tpu.core_type = #tpu.core_type<tc>, window_params = [{transform_indices = @transform_0, window_bounds = array<i64: 1, 512>}, {pipeline_mode = #tpu.pipeline_mode<synchronous>, transform_indices = @transform_1, window_bounds = array<i64: 3, 56, 56>}, {pipeline_mode = #tpu.pipeline_mode<synchronous>, transform_indices = @transform_2, window_bounds = array<i64: 56, 8>}, {transform_indices = @transform_3, window_bounds = array<i64: 1, 512>}]} {
    %c0 = arith.constant 0 : index
    %c0_0 = arith.constant 0 : index
    %0 = vector.load %arg3[%c0, %c0_0] : memref<56x8xf32, #tpu.memory_space<vmem>>, vector<56x1xf32>
    %c0_1 = arith.constant 0 : index
    %c1 = arith.constant 1 : index
    %1 = vector.load %arg3[%c0_1, %c1] : memref<56x8xf32, #tpu.memory_space<vmem>>, vector<56x1xf32>
    %c0_2 = arith.constant 0 : index
    %c2 = arith.constant 2 : index
    %2 = vector.load %arg3[%c0_2, %c2] : memref<56x8xf32, #tpu.memory_space<vmem>>, vector<56x1xf32>
    %c0_3 = arith.constant 0 : index
    %c3 = arith.constant 3 : index
    %3 = vector.load %arg3[%c0_3, %c3] : memref<56x8xf32, #tpu.memory_space<vmem>>, vector<56x1xf32>
    %c0_4 = arith.constant 0 : index
    %c4 = arith.constant 4 : index
    %4 = vector.load %arg3[%c0_4, %c4] : memref<56x8xf32, #tpu.memory_space<vmem>>, vector<56x1xf32>
    %c0_5 = arith.constant 0 : index
    %c5 = arith.constant 5 : index
    %5 = vector.load %arg3[%c0_5, %c5] : memref<56x8xf32, #tpu.memory_space<vmem>>, vector<56x1xf32>
    %c0_6 = arith.constant 0 : index
    %c6 = arith.constant 6 : index
    %6 = vector.load %arg3[%c0_6, %c6] : memref<56x8xf32, #tpu.memory_space<vmem>>, vector<1x1xf32>
    %c0_7 = arith.constant 0 : index
    %c0_8 = arith.constant 0 : index
    %c0_9 = arith.constant 0 : index
    %7 = vector.load %arg2[%c0_7, %c0_8, %c0_9] : memref<3x56x56xf32, #tpu.memory_space<vmem>>, vector<1x56x56xf32>
    %8 = vector.shape_cast %7 : vector<1x56x56xf32> to vector<56x56xf32>
    %c1_10 = arith.constant 1 : index
    %c0_11 = arith.constant 0 : index
    %c0_12 = arith.constant 0 : index
    %9 = vector.load %arg2[%c1_10, %c0_11, %c0_12] : memref<3x56x56xf32, #tpu.memory_space<vmem>>, vector<1x56x56xf32>
    %10 = vector.shape_cast %9 : vector<1x56x56xf32> to vector<56x56xf32>
    %c2_13 = arith.constant 2 : index
    %c0_14 = arith.constant 0 : index
    %c0_15 = arith.constant 0 : index
    %11 = vector.load %arg2[%c2_13, %c0_14, %c0_15] : memref<3x56x56xf32, #tpu.memory_space<vmem>>, vector<1x56x56xf32>
    %12 = vector.shape_cast %11 : vector<1x56x56xf32> to vector<56x56xf32>
    %c0_i32 = arith.constant 0 : i32
    %c256_i32 = arith.constant 256 : i32
    %13 = arith.muli %c0_i32, %c256_i32 : i32
    %14 = tpu.assume_multiple %13, 256 : i32
    %c0_16 = arith.constant 0 : index
    %15 = arith.index_cast %14 : i32 to index
    %16 = vector.load %arg1[%c0_16, %15] : memref<1x512xf32, #tpu.memory_space<vmem>>, vector<1x256xf32>
    %17 = vector.broadcast %0 : vector<56x1xf32> to vector<56x256xf32>
    %18 = vector.broadcast %16 : vector<1x256xf32> to vector<56x256xf32>
    %19 = arith.mulf %17, %18 : vector<56x256xf32>
    %20 = vector.broadcast %1 : vector<56x1xf32> to vector<56x256xf32>
    %21 = arith.addf %19, %20 : vector<56x256xf32>
    %22 = math.tanh %21 : vector<56x256xf32>
    %cst = arith.constant dense<0.000000e+00> : vector<56x256xf32>
    %23 = tpu.matmul %8, %22, %cst {dimension_numbers = #tpu.dot_dimension_numbers<[1], [0], [0], [1], [0, 0, 1, 1], [], []>} : vector<56x56xf32>, vector<56x256xf32>, vector<56x256xf32> -> vector<56x256xf32>
    %24 = vector.broadcast %2 : vector<56x1xf32> to vector<56x256xf32>
    %25 = arith.addf %23, %24 : vector<56x256xf32>
    %26 = math.tanh %25 : vector<56x256xf32>
    %cst_17 = arith.constant dense<0.000000e+00> : vector<56x256xf32>
    %27 = tpu.matmul %10, %26, %cst_17 {dimension_numbers = #tpu.dot_dimension_numbers<[1], [0], [0], [1], [0, 0, 1, 1], [], []>} : vector<56x56xf32>, vector<56x256xf32>, vector<56x256xf32> -> vector<56x256xf32>
    %28 = vector.broadcast %3 : vector<56x1xf32> to vector<56x256xf32>
    %29 = arith.addf %27, %28 : vector<56x256xf32>
    %30 = math.tanh %29 : vector<56x256xf32>
    %cst_18 = arith.constant dense<0.000000e+00> : vector<56x256xf32>
    %31 = tpu.matmul %12, %30, %cst_18 {dimension_numbers = #tpu.dot_dimension_numbers<[1], [0], [0], [1], [0, 0, 1, 1], [], []>} : vector<56x56xf32>, vector<56x256xf32>, vector<56x256xf32> -> vector<56x256xf32>
    %32 = vector.broadcast %4 : vector<56x1xf32> to vector<56x256xf32>
    %33 = arith.addf %31, %32 : vector<56x256xf32>
    %34 = math.tanh %33 : vector<56x256xf32>
    %35 = vector.broadcast %5 : vector<56x1xf32> to vector<56x256xf32>
    %36 = arith.mulf %34, %35 : vector<56x256xf32>
    %cst_19 = arith.constant dense<0.000000e+00> : vector<256xf32>
    %37 = vector.multi_reduction <add>, %36, %cst_19 [0] : vector<56x256xf32> to vector<256xf32>
    %38 = vector.shape_cast %37 : vector<256xf32> to vector<1x256xf32>
    %39 = vector.broadcast %6 : vector<1x1xf32> to vector<1x256xf32>
    %40 = arith.addf %38, %39 : vector<1x256xf32>
    %c0_20 = arith.constant 0 : index
    %41 = arith.index_cast %14 : i32 to index
    %42 = vector.load %arg4[%c0_20, %41] : memref<1x512xf32, #tpu.memory_space<vmem>>, vector<1x256xf32>
    tpu.vector_store %arg4[%c0_20, %41], %40 {strides = array<i32>} : memref<1x512xf32, #tpu.memory_space<vmem>>, vector<1x256xf32>,
    %c1_i32 = arith.constant 1 : i32
    %c256_i32_21 = arith.constant 256 : i32
    %43 = arith.muli %c1_i32, %c256_i32_21 : i32
    %44 = tpu.assume_multiple %43, 256 : i32
    %c0_22 = arith.constant 0 : index
    %45 = arith.index_cast %44 : i32 to index
    %46 = vector.load %arg1[%c0_22, %45] : memref<1x512xf32, #tpu.memory_space<vmem>>, vector<1x256xf32>
    %47 = vector.broadcast %0 : vector<56x1xf32> to vector<56x256xf32>
    %48 = vector.broadcast %46 : vector<1x256xf32> to vector<56x256xf32>
    %49 = arith.mulf %47, %48 : vector<56x256xf32>
    %50 = vector.broadcast %1 : vector<56x1xf32> to vector<56x256xf32>
    %51 = arith.addf %49, %50 : vector<56x256xf32>
    %52 = math.tanh %51 : vector<56x256xf32>
    %cst_23 = arith.constant dense<0.000000e+00> : vector<56x256xf32>
    %53 = tpu.matmul %8, %52, %cst_23 {dimension_numbers = #tpu.dot_dimension_numbers<[1], [0], [0], [1], [0, 0, 1, 1], [], []>} : vector<56x56xf32>, vector<56x256xf32>, vector<56x256xf32> -> vector<56x256xf32>
    %54 = vector.broadcast %2 : vector<56x1xf32> to vector<56x256xf32>
    %55 = arith.addf %53, %54 : vector<56x256xf32>
    %56 = math.tanh %55 : vector<56x256xf32>
    %cst_24 = arith.constant dense<0.000000e+00> : vector<56x256xf32>
    %57 = tpu.matmul %10, %56, %cst_24 {dimension_numbers = #tpu.dot_dimension_numbers<[1], [0], [0], [1], [0, 0, 1, 1], [], []>} : vector<56x56xf32>, vector<56x256xf32>, vector<56x256xf32> -> vector<56x256xf32>
    %58 = vector.broadcast %3 : vector<56x1xf32> to vector<56x256xf32>
    %59 = arith.addf %57, %58 : vector<56x256xf32>
    %60 = math.tanh %59 : vector<56x256xf32>
    %cst_25 = arith.constant dense<0.000000e+00> : vector<56x256xf32>
    %61 = tpu.matmul %12, %60, %cst_25 {dimension_numbers = #tpu.dot_dimension_numbers<[1], [0], [0], [1], [0, 0, 1, 1], [], []>} : vector<56x56xf32>, vector<56x256xf32>, vector<56x256xf32> -> vector<56x256xf32>
    %62 = vector.broadcast %4 : vector<56x1xf32> to vector<56x256xf32>
    %63 = arith.addf %61, %62 : vector<56x256xf32>
    %64 = math.tanh %63 : vector<56x256xf32>
    %65 = vector.broadcast %5 : vector<56x1xf32> to vector<56x256xf32>
    %66 = arith.mulf %64, %65 : vector<56x256xf32>
    %cst_26 = arith.constant dense<0.000000e+00> : vector<256xf32>
    %67 = vector.multi_reduction <add>, %66, %cst_26 [0] : vector<56x256xf32> to vector<256xf32>
    %68 = vector.shape_cast %67 : vector<256xf32> to vector<1x256xf32>
    %69 = vector.broadcast %6 : vector<1x1xf32> to vector<1x256xf32>
    %70 = arith.addf %68, %69 : vector<1x256xf32>
    %c0_27 = arith.constant 0 : index
    %71 = arith.index_cast %44 : i32 to index
    %72 = vector.load %arg4[%c0_27, %71] : memref<1x512xf32, #tpu.memory_space<vmem>>, vector<1x256xf32>
    tpu.vector_store %arg4[%c0_27, %71], %70 {strides = array<i32>} : memref<1x512xf32, #tpu.memory_space<vmem>>, vector<1x256xf32>,
    %c2_i32 = arith.constant 2 : i32
    return
  }
  func.func @transform_0(%arg0: i32) -> (i32, i32) {
    %c0_i32 = arith.constant 0 : i32
    %c0_i32_0 = arith.constant 0 : i32
    return %c0_i32, %arg0 : i32, i32
  }
  func.func @transform_1(%arg0: i32) -> (i32, i32, i32) {
    %c0_i32 = arith.constant 0 : i32
    %c0_i32_0 = arith.constant 0 : i32
    %c0_i32_1 = arith.constant 0 : i32
    %c0_i32_2 = arith.constant 0 : i32
    return %c0_i32, %c0_i32_0, %c0_i32_1 : i32, i32, i32
  }
  func.func @transform_2(%arg0: i32) -> (i32, i32) {
    %c0_i32 = arith.constant 0 : i32
    %c0_i32_0 = arith.constant 0 : i32
    %c0_i32_1 = arith.constant 0 : i32
    return %c0_i32, %c0_i32_0 : i32, i32
  }
  func.func @transform_3(%arg0: i32) -> (i32, i32) {
    %c0_i32 = arith.constant 0 : i32
    %c0_i32_0 = arith.constant 0 : i32
    return %c0_i32, %arg0 : i32, i32
  }
}

</mosaic_0001>

<llo_original>
// kernel: tpu_custom_call.1
$region0: #{tpu_custom_call.1}
  #allocation0 [shape = 'u32[]', space=smem, size = 0x4, offset = 0x4, fixed_abs, tag = 'smem constant byte address 0x4 - core index']
  #allocation1 [shape = 'u32[72,128]{1,0:T(1,128)}', space=vmem, size = 0x9000, scoped, tag = 'internal scratch']
  %s0 = inlined_call_operand.vmem [shape: f32[1,520], index: 0, kind: input, shape index: {}]
  %s1 = inlined_call_operand.hbm [shape: f32[3,56,56], index: 1, kind: input, shape index: {}]
  %s2 = inlined_call_operand.vmem [shape: f32[56,8], index: 2, kind: input, shape index: {}]
  %s3 = inlined_call_operand.hbm [shape: f32[1,520], index: 3, kind: output, shape index: {}]
  %s4 = sld [smem:[#allocation0]]
  $region49: #{tpu_custom_call.1} parent=0
    _
  %s6 = ssub.s32 1, %s4
  %s7 = scalar_select 0, %s6, %s4
  $region1: #{tpu_custom_call.1} parent=0
    #allocation2 [shape = 'u8[86016]{0}', space=vmem, size = 0x15000, scoped, tag = 'input window, operand 1, single buffered']
    #allocation3 [shape = 's32[2]{0}', space=sflag, size = 0x8, scoped, tag = 'scoped memory for tpu_custom_call.1']
    #allocation4 [shape = 's32[2]{0}', space=sflag, size = 0x8, scoped, tag = 'scoped memory for tpu_custom_call.1']
    #allocation5 [shape = 'u8[4096]{0}', space=vmem, size = 0x1000, scoped, tag = 'output window, operand 0']
    %8 = vsyncpa [#allocation3], 0
    %9 = vsyncpa [#allocation4], 0
    %s10 = scalar_lea.sflag [#allocation4], 1
    %11 = vsyncpa %s10, 0
    loop: start=0, step=1, limit=4
    $region2: #{tpu_custom_call.1} parent=1 // loop_pre_header
      _
    $region3: #{tpu_custom_call.1} parent=1 // loop_header
      %s13 = sphi 0, %s17
      %p14 = scmp.ge.s32.totalorder %s13, 4
      %s23 = sphi 0, %s25
      %s26 = sphi 0, %s23
      %s27 = sphi 0, %s26
      %s43 = sphi 0, %s27
      %s47 = sphi 0, %s47
      %s49 = sphi 0, %s47
      %s50 = sphi 0, %s49
      %s64 = sphi 0, %s50
      %s68 = sphi 0, %s68
      %s70 = sphi 0, %s68
      %s71 = sphi 0, %s70
      %s85 = sphi 0, %s71
      %s91 = sphi 0, %s93
      %s94 = sphi 0, %s91
      %s95 = sphi 0, %s94
      %s111 = sphi 0, %s95
    $region4: #{tpu_custom_call.1} parent=1 // loop_header_branch
      %16 = sbr.rel (%p14) target = $region8
    $region5: #{tpu_custom_call.1} parent=1 // loop_body
      %s18 = ssub.s32 %s13, 1
      %s19 = ssub.s32 %s13, 2
      %s20 = sadd.s32 %s13, 1
      %s21 = ssub.s32 %s13, %s20
      %p22 = scmp.eq.s32.totalorder %s21, 0
      %s24 = sadd.s32 %s23, 1
      %s25 = scalar_select %p22, %s23, %s24
      %p28 = pneg %p22
      %p29 = scmp.eq.s32.totalorder %s13, 1
      %p30 = por %p28, %p29
      %p31 = scmp.ne.s32.totalorder %s23, %s26
      %p32 = scmp.eq.s32.totalorder %s13, 0
      %p33 = por %p31, %p32
      %p34 = scmp.ne.s32.totalorder %s23, %s26
      %p35 = scmp.eq.s32.totalorder %s18, 1
      %p36 = por %p34, %p35
      %p37 = scmp.ne.s32.totalorder %s26, %s27
      %p38 = scmp.eq.s32.totalorder %s18, 0
      %p39 = por %p37, %p38
      %p40 = scmp.ne.s32.totalorder %s26, %s27
      %p41 = scmp.eq.s32.totalorder %s19, 1
      %p42 = por %p40, %p41
      %p44 = scmp.ne.s32.totalorder %s27, %s43
      %p45 = scmp.eq.s32.totalorder %s19, 0
      %p46 = por %p44, %p45
      %s48 = sadd.s32 %s47, 1
      %p51 = scmp.eq.s32.totalorder %s13, 1
      %p52 = scmp.ne.s32.totalorder %s47, %s49
      %p53 = scmp.eq.s32.totalorder %s13, 0
      %p54 = por %p52, %p53
      %p55 = scmp.ne.s32.totalorder %s47, %s49
      %p56 = scmp.eq.s32.totalorder %s18, 1
      %p57 = por %p55, %p56
      %p58 = scmp.ne.s32.totalorder %s49, %s50
      %p59 = scmp.eq.s32.totalorder %s18, 0
      %p60 = por %p58, %p59
      %p61 = scmp.ne.s32.totalorder %s49, %s50
      %p62 = scmp.eq.s32.totalorder %s19, 1
      %p63 = por %p61, %p62
      %p65 = scmp.ne.s32.totalorder %s50, %s64
      %p66 = scmp.eq.s32.totalorder %s19, 0
      %p67 = por %p65, %p66
      %s69 = sadd.s32 %s68, 1
      %p72 = scmp.eq.s32.totalorder %s13, 1
      %p73 = scmp.ne.s32.totalorder %s68, %s70
      %p74 = scmp.eq.s32.totalorder %s13, 0
      %p75 = por %p73, %p74
      %p76 = scmp.ne.s32.totalorder %s68, %s70
      %p77 = scmp.eq.s32.totalorder %s18, 1
      %p78 = por %p76, %p77
      %p79 = scmp.ne.s32.totalorder %s70, %s71
      %p80 = scmp.eq.s32.totalorder %s18, 0
      %p81 = por %p79, %p80
      %p82 = scmp.ne.s32.totalorder %s70, %s71
      %p83 = scmp.eq.s32.totalorder %s19, 1
      %p84 = por %p82, %p83
      %p86 = scmp.ne.s32.totalorder %s71, %s85
      %p87 = scmp.eq.s32.totalorder %s19, 0
      %p88 = por %p86, %p87
      %s89 = ssub.s32 %s13, %s20
      %p90 = scmp.eq.s32.totalorder %s89, 0
      %s92 = sadd.s32 %s91, 1
      %s93 = scalar_select %p90, %s91, %s92
      %p96 = pneg %p90
      %p97 = scmp.eq.s32.totalorder %s13, 1
      %p98 = por %p96, %p97
      %p99 = scmp.ne.s32.totalorder %s91, %s94
      %p100 = scmp.eq.s32.totalorder %s13, 0
      %p101 = por %p99, %p100
      %p102 = scmp.ne.s32.totalorder %s91, %s94
      %p103 = scmp.eq.s32.totalorder %s18, 1
      %p104 = por %p102, %p103
      %p105 = scmp.ne.s32.totalorder %s94, %s95
      %p106 = scmp.eq.s32.totalorder %s18, 0
      %p107 = por %p105, %p106
      %p108 = scmp.ne.s32.totalorder %s94, %s95
      %p109 = scmp.eq.s32.totalorder %s19, 1
      %p110 = por %p108, %p109
      %p112 = scmp.ne.s32.totalorder %s95, %s111
      %p113 = scmp.eq.s32.totalorder %s19, 0
      %p114 = por %p112, %p113
      %p115 = scmp.le.s32.totalorder 1, %s13
      %p116 = scmp.lt.s32.totalorder %s13, 3
      %p117 = pnand %p115, %p116
      %p118 = pneg %p117
      // Predicated region
      $region9: #{tpu_custom_call.1} parent=5 // pred_check
        _
      $region10: #{tpu_custom_call.1} parent=5 // pred_check_branch
        %120 = sbr.rel (%p117) target = $region12
      $region11: #{tpu_custom_call.1} parent=5 // pred_region
        %s121 = ssub.s32 %s13, 1
        // Predicated region
        $region13: #{tpu_custom_call.1} parent=11 // pred_check
          %p122 = pneg %p60
        $region14: #{tpu_custom_call.1} parent=11 // pred_check_branch
          %124 = sbr.rel (%p122) target = $region16
        $region15: #{tpu_custom_call.1} parent=11 // pred_region
          %126 = vsyncadd [#allocation3], 0
          %s127 = sshll.u32 %s1, 4
          %s128 = int_to_ptr.hbm [resolvable:$true] %s127
          %s129 = sshll.u32 [#allocation2], 4
          %s130 = int_to_ptr.vmem [resolvable:$true] %s129
          %135 = dma.hbm_to_vmem [thread:$0]  %s128, 2688, %s130, [#allocation3], 128, 128, 8
        $region16: #{tpu_custom_call.1} parent=11 // pred_fallthru
          _
        // Predicated region
        $region17: #{tpu_custom_call.1} parent=11 // pred_check
          %p136 = pneg %p81
        $region18: #{tpu_custom_call.1} parent=11 // pred_check_branch
          %138 = sbr.rel (%p136) target = $region20
        $region19: #{tpu_custom_call.1} parent=11 // pred_region
          _
        $region20: #{tpu_custom_call.1} parent=11 // pred_fallthru
          _
      $region12: #{tpu_custom_call.1} parent=5 // pred_fallthru
        _
      %p139 = scmp.lt.s32.totalorder %s13, 2
      // Predicated region
      $region21: #{tpu_custom_call.1} parent=5 // pred_check
        %p140 = pneg %p139
      $region22: #{tpu_custom_call.1} parent=5 // pred_check_branch
        %142 = sbr.rel (%p140) target = $region24
      $region23: #{tpu_custom_call.1} parent=5 // pred_region
        // Predicated region
        $region25: #{tpu_custom_call.1} parent=23 // pred_check
          %p143 = pneg %p33
        $region26: #{tpu_custom_call.1} parent=23 // pred_check_branch
          %145 = sbr.rel (%p143) target = $region28
        $region27: #{tpu_custom_call.1} parent=23 // pred_region
          %s146 = smul.u32 4, %s13
          %s147 = ssub.s32 5, %s146
          %p148 = scmp.lt.s32.totalorder %s147, 4
          %s149 = scalar_select %p148, %s147, 4
          %p150 = scmp.lt.s32.totalorder %s146, 4
          %s151 = scalar_select %p150, %s146, 4
          %s152 = scalar_lea.vmem %s0, %s151
          %s153 = smul.u32 4, %s13
          %s154 = ssub.s32 5, %s153
          %p155 = scmp.lt.s32.totalorder %s154, 4
          %s156 = scalar_select %p155, %s154, 4
        $region28: #{tpu_custom_call.1} parent=23 // pred_fallthru
          _
      $region24: #{tpu_custom_call.1} parent=5 // pred_fallthru
        _
      %p157 = scmp.le.s32.totalorder 1, %s13
      %p158 = scmp.lt.s32.totalorder %s13, 3
      %p159 = pnand %p157, %p158
      %p160 = pneg %p159
      // Predicated region
      $region29: #{tpu_custom_call.1} parent=5 // pred_check
        _
      $region30: #{tpu_custom_call.1} parent=5 // pred_check_branch
        %162 = sbr.rel (%p159) target = $region32
      $region31: #{tpu_custom_call.1} parent=5 // pred_region
        %s163 = ssub.s32 %s13, 1
        // Predicated region
        $region33: #{tpu_custom_call.1} parent=31 // pred_check
          %p164 = pneg %p60
        $region34: #{tpu_custom_call.1} parent=31 // pred_check_branch
          %166 = sbr.rel (%p164) target = $region36
        $region35: #{tpu_custom_call.1} parent=31 // pred_region
          %168 = dma.done [#allocation3], 2688
        $region36: #{tpu_custom_call.1} parent=31 // pred_fallthru
          _
        %s169 = smul.u32 4, %s18
        %s170 = ssub.s32 5, %s169
        %p171 = scmp.lt.s32.totalorder %s170, 4
        %s172 = scalar_select %p171, %s170, 4
        %p173 = scmp.lt.s32.totalorder %s169, 4
        %s174 = scalar_select %p173, %s169, 4
        %s175 = scalar_lea.vmem %s0, %s174
        %p176 = pneg %p39
        %p177 = pneg %p36
        %p178 = pneg %p60
        %p179 = pneg %p57
        %p180 = pneg %p81
        %p181 = pneg %p78
        %p182 = pneg %p107
        %p183 = pneg %p104
        %s184 = sand.u32 %s94, 1
        %s185 = scalar_lea.sflag [#allocation4], %s184
        %s186 = sand.u32 %s94, 1
        %s187 = smul.addr %s186, 4
        %s188 = scalar_lea.vmem [#allocation5], %s187
        %s189 = smul.u32 4, %s18
        %s190 = ssub.s32 5, %s189
        %p191 = scmp.lt.s32.totalorder %s190, 4
        %s192 = scalar_select %p191, %s190, 4
        %p193 = scmp.lt.s32.totalorder %s189, 4
        %s194 = scalar_select %p193, %s189, 4
        %s195 = scalar_lea.vmem %s0, %s194
        %s196 = smul.u32 4, %s18
        %s197 = ssub.s32 5, %s196
        %p198 = scmp.lt.s32.totalorder %s197, 4
        %s199 = scalar_select %p198, %s197, 4
        %s200 = smul.u32 4, %s18
        %s201 = ssub.s32 5, %s200
        %p202 = scmp.lt.s32.totalorder %s201, 4
        %s203 = scalar_select %p202, %s201, 4
        %v204 = vld [vmem:[%s2] sm:$0xff]
        %v205 = vld [vmem:[%s2 + $0x8] sm:$0xff]
        %v206 = vld [vmem:[%s2 + $0x10] sm:$0xff]
        %v207 = vld [vmem:[%s2 + $0x18] sm:$0xff]
        %v208 = vld [vmem:[%s2 + $0x20] sm:$0xff]
        %v209 = vld [vmem:[%s2 + $0x28] sm:$0xff]
        %v210 = vld [vmem:[%s2 + $0x30] sm:$0xff]
        %v211 = vld [vmem:[%s2] sm:$0x1]
        %v212 = vld [vmem:[#allocation2] sm:$0xff]
        %v213 = vld [vmem:[#allocation2 + $0x8] sm:$0xff]
        %v214 = vld [vmem:[#allocation2 + $0x10] sm:$0xff]
        %v215 = vld [vmem:[#allocation2 + $0x18] sm:$0xff]
        %v216 = vld [vmem:[#allocation2 + $0x20] sm:$0xff]
        %v217 = vld [vmem:[#allocation2 + $0x28] sm:$0xff]
        %v218 = vld [vmem:[#allocation2 + $0x30] sm:$0xff]
        %s219 = scalar_lea.vmem [#allocation2], 56
        %v220 = vld [vmem:[%s219] sm:$0xff]
        %v221 = vld [vmem:[%s219 + $0x8] sm:$0xff]
        %v222 = vld [vmem:[%s219 + $0x10] sm:$0xff]
        %v223 = vld [vmem:[%s219 + $0x18] sm:$0xff]
        %v224 = vld [vmem:[%s219 + $0x20] sm:$0xff]
        %v225 = vld [vmem:[%s219 + $0x28] sm:$0xff]
        %v226 = vld [vmem:[%s219 + $0x30] sm:$0xff]
        %s227 = scalar_lea.vmem [#allocation2], 112
        %v228 = vld [vmem:[%s227] sm:$0xff]
        %v229 = vld [vmem:[%s227 + $0x8] sm:$0xff]
        %v230 = vld [vmem:[%s227 + $0x10] sm:$0xff]
        %v231 = vld [vmem:[%s227 + $0x18] sm:$0xff]
        %v232 = vld [vmem:[%s227 + $0x20] sm:$0xff]
        %v233 = vld [vmem:[%s227 + $0x28] sm:$0xff]
        %v234 = vld [vmem:[%s227 + $0x30] sm:$0xff]
        %v235 = vld [vmem:[%s195] sm:$0x3]
        %237 = vset.pattern.permute.xlu0 0
        %238 = vperm.xlu0 %237, %v204
        %v239 = vpop.permute.xlu0 %238
        %242 = vset.pattern.permute.xlu0 0
        %243 = vperm.xlu0 %242, %v205
        %v244 = vpop.permute.xlu0 %243
        %247 = vset.pattern.permute.xlu0 0
        %248 = vperm.xlu0 %247, %v206
        %v249 = vpop.permute.xlu0 %248
        %252 = vset.pattern.permute.xlu0 0
        %253 = vperm.xlu0 %252, %v207
        %v254 = vpop.permute.xlu0 %253
        %257 = vset.pattern.permute.xlu0 0
        %258 = vperm.xlu0 %257, %v208
        %v259 = vpop.permute.xlu0 %258
        %262 = vset.pattern.permute.xlu0 0
        %263 = vperm.xlu0 %262, %v209
        %v264 = vpop.permute.xlu0 %263
        %267 = vset.pattern.permute.xlu0 0
        %268 = vperm.xlu0 %267, %v210
        %v269 = vpop.permute.xlu0 %268
        %v272 = vperm.slane %v235, 0
        %v273 = vperm.slane %v235, 1
        %v276 = vmul.f32 %v239, %v272
        %v277 = vmul.f32 %v239, %v273
        %v278 = vmul.f32 %v244, %v272
        %v279 = vmul.f32 %v244, %v273
        %v280 = vmul.f32 %v249, %v272
        %v281 = vmul.f32 %v249, %v273
        %v282 = vmul.f32 %v254, %v272
        %v283 = vmul.f32 %v254, %v273
        %v284 = vmul.f32 %v259, %v272
        %v285 = vmul.f32 %v259, %v273
        %v286 = vmul.f32 %v264, %v272
        %v287 = vmul.f32 %v264, %v273
        %v288 = vmul.f32 %v269, %v272
        %v289 = vmul.f32 %v269, %v273
        %290 = vset.pattern.permute.xlu0 1
        %291 = vperm.xlu0 %290, %v204
        %v292 = vpop.permute.xlu0 %291
        %294 = vset.pattern.permute.xlu0 1
        %295 = vperm.xlu0 %294, %v205
        %v296 = vpop.permute.xlu0 %295
        %298 = vset.pattern.permute.xlu0 1
        %299 = vperm.xlu0 %298, %v206
        %v300 = vpop.permute.xlu0 %299
        %302 = vset.pattern.permute.xlu0 1
        %303 = vperm.xlu0 %302, %v207
        %v304 = vpop.permute.xlu0 %303
        %306 = vset.pattern.permute.xlu0 1
        %307 = vperm.xlu0 %306, %v208
        %v308 = vpop.permute.xlu0 %307
        %310 = vset.pattern.permute.xlu0 1
        %311 = vperm.xlu0 %310, %v209
        %v312 = vpop.permute.xlu0 %311
        %314 = vset.pattern.permute.xlu0 1
        %315 = vperm.xlu0 %314, %v210
        %v316 = vpop.permute.xlu0 %315
        %v318 = vadd.f32 %v276, %v292
        %v319 = vadd.f32 %v277, %v292
        %v320 = vadd.f32 %v278, %v296
        %v321 = vadd.f32 %v279, %v296
        %v322 = vadd.f32 %v280, %v300
        %v323 = vadd.f32 %v281, %v300
        %v324 = vadd.f32 %v282, %v304
        %v325 = vadd.f32 %v283, %v304
        %v326 = vadd.f32 %v284, %v308
        %v327 = vadd.f32 %v285, %v308
        %v328 = vadd.f32 %v286, %v312
        %v329 = vadd.f32 %v287, %v312
        %v330 = vadd.f32 %v288, %v316
        %v331 = vadd.f32 %v289, %v316
        %v332 = vtanh.pop %v318
        %v333 = vtanh.pop %v319
        %v334 = vtanh.pop %v320
        %v335 = vtanh.pop %v321
        %v336 = vtanh.pop %v322
        %v337 = vtanh.pop %v323
        %v338 = vtanh.pop %v324
        %v339 = vtanh.pop %v325
        %v340 = vtanh.pop %v326
        %v341 = vtanh.pop %v327
        %v342 = vtanh.pop %v328
        %v343 = vtanh.pop %v329
        %v344 = vtanh.pop %v330
        %v345 = vtanh.pop %v331
        %346 = vset.pattern.permute.xlu0 2
        %347 = vperm.xlu0 %346, %v204
        %v348 = vpop.permute.xlu0 %347
        %350 = vset.pattern.permute.xlu0 2
        %351 = vperm.xlu0 %350, %v205
        %v352 = vpop.permute.xlu0 %351
        %354 = vset.pattern.permute.xlu0 2
        %355 = vperm.xlu0 %354, %v206
        %v356 = vpop.permute.xlu0 %355
        %358 = vset.pattern.permute.xlu0 2
        %359 = vperm.xlu0 %358, %v207
        %v360 = vpop.permute.xlu0 %359
        %362 = vset.pattern.permute.xlu0 2
        %363 = vperm.xlu0 %362, %v208
        %v364 = vpop.permute.xlu0 %363
        %366 = vset.pattern.permute.xlu0 2
        %367 = vperm.xlu0 %366, %v209
        %v368 = vpop.permute.xlu0 %367
        %370 = vset.pattern.permute.xlu0 2
        %371 = vperm.xlu0 %370, %v210
        %v372 = vpop.permute.xlu0 %371
        %vm374 = vcmask 457728
        %v376 = vsel %vm374, %v212, 0
        %v379 = vsel %vm374, %v213, 0
        %v382 = vsel %vm374, %v214, 0
        %v385 = vsel %vm374, %v215, 0
        %v388 = vsel %vm374, %v216, 0
        %v391 = vsel %vm374, %v217, 0
        %v394 = vsel %vm374, %v218, 0
        %396 = vmatpush.msra.mxu0 0.0
        %397 = vmatpush.msra.mxu0 0.0
        %398 = vmatpush.msra.mxu0 0.0
        %399 = vmatpush.msra.mxu0 0.0
        %400 = vmatpush.msra.mxu0 0.0
        %401 = vmatpush.msra.mxu0 0.0
        %402 = vmatpush.msra.mxu0 0.0
        %403 = vmatpush.msra.mxu0 0.0
        %404 = vmatpush.msra.mxu0 0.0
        %405 = vmatpush.msra.mxu0 %v344
        %406 = vmatpush.msra.mxu0 %v342
        %407 = vmatpush.msra.mxu0 %v340
        %408 = vmatpush.msra.mxu0 %v338
        %409 = vmatpush.msra.mxu0 %v336
        %410 = vmatpush.msra.mxu0 %v334
        %411 = vmatpush.msra.mxu0 %v332
        %412 = vmatmul.f32.gmra.mxu0 %v376
        %v413 = vpop.f32.mrf.mxu0
        %v414 = vadd.f32 %v348, %v413
        %415 = vmatmul.f32.gmra.mxu0 %v379
        %v416 = vpop.f32.mrf.mxu0
        %v417 = vadd.f32 %v352, %v416
        %418 = vmatmul.f32.gmra.mxu0 %v382
        %v419 = vpop.f32.mrf.mxu0
        %v420 = vadd.f32 %v356, %v419
        %421 = vmatmul.f32.gmra.mxu0 %v385
        %v422 = vpop.f32.mrf.mxu0
        %v423 = vadd.f32 %v360, %v422
        %424 = vmatmul.f32.gmra.mxu0 %v388
        %v425 = vpop.f32.mrf.mxu0
        %v426 = vadd.f32 %v364, %v425
        %427 = vmatmul.f32.gmra.mxu0 %v391
        %v428 = vpop.f32.mrf.mxu0
        %v429 = vadd.f32 %v368, %v428
        %430 = vmatmul.f32.gmra.mxu0 %v394
        %v431 = vpop.f32.mrf.mxu0
        %v432 = vadd.f32 %v372, %v431
        %433 = vdwg.mxu0
        %434 = vmatpush.msra.mxu0 0.0
        %435 = vmatpush.msra.mxu0 0.0
        %436 = vmatpush.msra.mxu0 0.0
        %437 = vmatpush.msra.mxu0 0.0
        %438 = vmatpush.msra.mxu0 0.0
        %439 = vmatpush.msra.mxu0 0.0
        %440 = vmatpush.msra.mxu0 0.0
        %441 = vmatpush.msra.mxu0 0.0
        %442 = vmatpush.msra.mxu0 0.0
        %443 = vmatpush.msra.mxu0 %v345
        %444 = vmatpush.msra.mxu0 %v343
        %445 = vmatpush.msra.mxu0 %v341
        %446 = vmatpush.msra.mxu0 %v339
        %447 = vmatpush.msra.mxu0 %v337
        %448 = vmatpush.msra.mxu0 %v335
        %449 = vmatpush.msra.mxu0 %v333
        %450 = vmatmul.f32.gmra.mxu0 %v376
        %v451 = vpop.f32.mrf.mxu0
        %v452 = vadd.f32 %v348, %v451
        %453 = vmatmul.f32.gmra.mxu0 %v379
        %v454 = vpop.f32.mrf.mxu0
        %v455 = vadd.f32 %v352, %v454
        %456 = vmatmul.f32.gmra.mxu0 %v382
        %v457 = vpop.f32.mrf.mxu0
        %v458 = vadd.f32 %v356, %v457
        %459 = vmatmul.f32.gmra.mxu0 %v385
        %v460 = vpop.f32.mrf.mxu0
        %v461 = vadd.f32 %v360, %v460
        %462 = vmatmul.f32.gmra.mxu0 %v388
        %v463 = vpop.f32.mrf.mxu0
        %v464 = vadd.f32 %v364, %v463
        %465 = vmatmul.f32.gmra.mxu0 %v391
        %v466 = vpop.f32.mrf.mxu0
        %v467 = vadd.f32 %v368, %v466
        %468 = vmatmul.f32.gmra.mxu0 %v394
        %v469 = vpop.f32.mrf.mxu0
        %v470 = vadd.f32 %v372, %v469
        %471 = vdwg.mxu0
        %v472 = vtanh.pop %v414
        %v473 = vtanh.pop %v452
        %v474 = vtanh.pop %v417
        %v475 = vtanh.pop %v455
        %v476 = vtanh.pop %v420
        %v477 = vtanh.pop %v458
        %v478 = vtanh.pop %v423
        %v479 = vtanh.pop %v461
        %v480 = vtanh.pop %v426
        %v481 = vtanh.pop %v464
        %v482 = vtanh.pop %v429
        %v483 = vtanh.pop %v467
        %v484 = vtanh.pop %v432
        %v485 = vtanh.pop %v470
        %486 = vset.pattern.permute.xlu0 3
        %487 = vperm.xlu0 %486, %v204
        %v488 = vpop.permute.xlu0 %487
        %490 = vset.pattern.permute.xlu0 3
        %491 = vperm.xlu0 %490, %v205
        %v492 = vpop.permute.xlu0 %491
        %494 = vset.pattern.permute.xlu0 3
        %495 = vperm.xlu0 %494, %v206
        %v496 = vpop.permute.xlu0 %495
        %498 = vset.pattern.permute.xlu0 3
        %499 = vperm.xlu0 %498, %v207
        %v500 = vpop.permute.xlu0 %499
        %502 = vset.pattern.permute.xlu0 3
        %503 = vperm.xlu0 %502, %v208
        %v504 = vpop.permute.xlu0 %503
        %506 = vset.pattern.permute.xlu0 3
        %507 = vperm.xlu0 %506, %v209
        %v508 = vpop.permute.xlu0 %507
        %510 = vset.pattern.permute.xlu0 3
        %511 = vperm.xlu0 %510, %v210
        %v512 = vpop.permute.xlu0 %511
        %v515 = vsel %vm374, %v220, 0
        %v518 = vsel %vm374, %v221, 0
        %v521 = vsel %vm374, %v222, 0
        %v524 = vsel %vm374, %v223, 0
        %v527 = vsel %vm374, %v224, 0
        %v530 = vsel %vm374, %v225, 0
        %v533 = vsel %vm374, %v226, 0
        %535 = vmatpush.msra.mxu0 0.0
        %536 = vmatpush.msra.mxu0 0.0
        %537 = vmatpush.msra.mxu0 0.0
        %538 = vmatpush.msra.mxu0 0.0
        %539 = vmatpush.msra.mxu0 0.0
        %540 = vmatpush.msra.mxu0 0.0
        %541 = vmatpush.msra.mxu0 0.0
        %542 = vmatpush.msra.mxu0 0.0
        %543 = vmatpush.msra.mxu0 0.0
        %544 = vmatpush.msra.mxu0 %v484
        %545 = vmatpush.msra.mxu0 %v482
        %546 = vmatpush.msra.mxu0 %v480
        %547 = vmatpush.msra.mxu0 %v478
        %548 = vmatpush.msra.mxu0 %v476
        %549 = vmatpush.msra.mxu0 %v474
        %550 = vmatpush.msra.mxu0 %v472
        %551 = vmatmul.f32.gmra.mxu0 %v515
        %v552 = vpop.f32.mrf.mxu0
        %v553 = vadd.f32 %v488, %v552
        %554 = vmatmul.f32.gmra.mxu0 %v518
        %v555 = vpop.f32.mrf.mxu0
        %v556 = vadd.f32 %v492, %v555
        %557 = vmatmul.f32.gmra.mxu0 %v521
        %v558 = vpop.f32.mrf.mxu0
        %v559 = vadd.f32 %v496, %v558
        %560 = vmatmul.f32.gmra.mxu0 %v524
        %v561 = vpop.f32.mrf.mxu0
        %v562 = vadd.f32 %v500, %v561
        %563 = vmatmul.f32.gmra.mxu0 %v527
        %v564 = vpop.f32.mrf.mxu0
        %v565 = vadd.f32 %v504, %v564
        %566 = vmatmul.f32.gmra.mxu0 %v530
        %v567 = vpop.f32.mrf.mxu0
        %v568 = vadd.f32 %v508, %v567
        %569 = vmatmul.f32.gmra.mxu0 %v533
        %v570 = vpop.f32.mrf.mxu0
        %v571 = vadd.f32 %v512, %v570
        %572 = vdwg.mxu0
        %573 = vmatpush.msra.mxu0 0.0
        %574 = vmatpush.msra.mxu0 0.0
        %575 = vmatpush.msra.mxu0 0.0
        %576 = vmatpush.msra.mxu0 0.0
        %577 = vmatpush.msra.mxu0 0.0
        %578 = vmatpush.msra.mxu0 0.0
        %579 = vmatpush.msra.mxu0 0.0
        %580 = vmatpush.msra.mxu0 0.0
        %581 = vmatpush.msra.mxu0 0.0
        %582 = vmatpush.msra.mxu0 %v485
        %583 = vmatpush.msra.mxu0 %v483
        %584 = vmatpush.msra.mxu0 %v481
        %585 = vmatpush.msra.mxu0 %v479
        %586 = vmatpush.msra.mxu0 %v477
        %587 = vmatpush.msra.mxu0 %v475
        %588 = vmatpush.msra.mxu0 %v473
        %589 = vmatmul.f32.gmra.mxu0 %v515
        %v590 = vpop.f32.mrf.mxu0
        %v591 = vadd.f32 %v488, %v590
        %592 = vmatmul.f32.gmra.mxu0 %v518
        %v593 = vpop.f32.mrf.mxu0
        %v594 = vadd.f32 %v492, %v593
        %595 = vmatmul.f32.gmra.mxu0 %v521
        %v596 = vpop.f32.mrf.mxu0
        %v597 = vadd.f32 %v496, %v596
        %598 = vmatmul.f32.gmra.mxu0 %v524
        %v599 = vpop.f32.mrf.mxu0
        %v600 = vadd.f32 %v500, %v599
        %601 = vmatmul.f32.gmra.mxu0 %v527
        %v602 = vpop.f32.mrf.mxu0
        %v603 = vadd.f32 %v504, %v602
        %604 = vmatmul.f32.gmra.mxu0 %v530
        %v605 = vpop.f32.mrf.mxu0
        %v606 = vadd.f32 %v508, %v605
        %607 = vmatmul.f32.gmra.mxu0 %v533
        %v608 = vpop.f32.mrf.mxu0
        %v609 = vadd.f32 %v512, %v608
        %610 = vdwg.mxu0
        %v611 = vtanh.pop %v553
        %v612 = vtanh.pop %v591
        %v613 = vtanh.pop %v556
        %v614 = vtanh.pop %v594
        %v615 = vtanh.pop %v559
        %v616 = vtanh.pop %v597
        %v617 = vtanh.pop %v562
        %v618 = vtanh.pop %v600
        %v619 = vtanh.pop %v565
        %v620 = vtanh.pop %v603
        %v621 = vtanh.pop %v568
        %v622 = vtanh.pop %v606
        %v623 = vtanh.pop %v571
        %v624 = vtanh.pop %v609
        %625 = vset.pattern.permute.xlu0 4
        %626 = vperm.xlu0 %625, %v204
        %v627 = vpop.permute.xlu0 %626
        %629 = vset.pattern.permute.xlu0 4
        %630 = vperm.xlu0 %629, %v205
        %v631 = vpop.permute.xlu0 %630
        %633 = vset.pattern.permute.xlu0 4
        %634 = vperm.xlu0 %633, %v206
        %v635 = vpop.permute.xlu0 %634
        %637 = vset.pattern.permute.xlu0 4
        %638 = vperm.xlu0 %637, %v207
        %v639 = vpop.permute.xlu0 %638
        %641 = vset.pattern.permute.xlu0 4
        %642 = vperm.xlu0 %641, %v208
        %v643 = vpop.permute.xlu0 %642
        %645 = vset.pattern.permute.xlu0 4
        %646 = vperm.xlu0 %645, %v209
        %v647 = vpop.permute.xlu0 %646
        %649 = vset.pattern.permute.xlu0 4
        %650 = vperm.xlu0 %649, %v210
        %v651 = vpop.permute.xlu0 %650
        %v654 = vsel %vm374, %v228, 0
        %v657 = vsel %vm374, %v229, 0
        %v660 = vsel %vm374, %v230, 0
        %v663 = vsel %vm374, %v231, 0
        %v666 = vsel %vm374, %v232, 0
        %v669 = vsel %vm374, %v233, 0
        %v672 = vsel %vm374, %v234, 0
        %674 = vmatpush.msra.mxu0 0.0
        %675 = vmatpush.msra.mxu0 0.0
        %676 = vmatpush.msra.mxu0 0.0
        %677 = vmatpush.msra.mxu0 0.0
        %678 = vmatpush.msra.mxu0 0.0
        %679 = vmatpush.msra.mxu0 0.0
        %680 = vmatpush.msra.mxu0 0.0
        %681 = vmatpush.msra.mxu0 0.0
        %682 = vmatpush.msra.mxu0 0.0
        %683 = vmatpush.msra.mxu0 %v623
        %684 = vmatpush.msra.mxu0 %v621
        %685 = vmatpush.msra.mxu0 %v619
        %686 = vmatpush.msra.mxu0 %v617
        %687 = vmatpush.msra.mxu0 %v615
        %688 = vmatpush.msra.mxu0 %v613
        %689 = vmatpush.msra.mxu0 %v611
        %690 = vmatmul.f32.gmra.mxu0 %v654
        %v691 = vpop.f32.mrf.mxu0
        %v692 = vadd.f32 %v627, %v691
        %693 = vmatmul.f32.gmra.mxu0 %v657
        %v694 = vpop.f32.mrf.mxu0
        %v695 = vadd.f32 %v631, %v694
        %696 = vmatmul.f32.gmra.mxu0 %v660
        %v697 = vpop.f32.mrf.mxu0
        %v698 = vadd.f32 %v635, %v697
        %699 = vmatmul.f32.gmra.mxu0 %v663
        %v700 = vpop.f32.mrf.mxu0
        %v701 = vadd.f32 %v639, %v700
        %702 = vmatmul.f32.gmra.mxu0 %v666
        %v703 = vpop.f32.mrf.mxu0
        %v704 = vadd.f32 %v643, %v703
        %705 = vmatmul.f32.gmra.mxu0 %v669
        %v706 = vpop.f32.mrf.mxu0
        %v707 = vadd.f32 %v647, %v706
        %708 = vmatmul.f32.gmra.mxu0 %v672
        %v709 = vpop.f32.mrf.mxu0
        %v710 = vadd.f32 %v651, %v709
        %711 = vdwg.mxu0
        %712 = vmatpush.msra.mxu0 0.0
        %713 = vmatpush.msra.mxu0 0.0
        %714 = vmatpush.msra.mxu0 0.0
        %715 = vmatpush.msra.mxu0 0.0
        %716 = vmatpush.msra.mxu0 0.0
        %717 = vmatpush.msra.mxu0 0.0
        %718 = vmatpush.msra.mxu0 0.0
        %719 = vmatpush.msra.mxu0 0.0
        %720 = vmatpush.msra.mxu0 0.0
        %721 = vmatpush.msra.mxu0 %v624
        %722 = vmatpush.msra.mxu0 %v622
        %723 = vmatpush.msra.mxu0 %v620
        %724 = vmatpush.msra.mxu0 %v618
        %725 = vmatpush.msra.mxu0 %v616
        %726 = vmatpush.msra.mxu0 %v614
        %727 = vmatpush.msra.mxu0 %v612
        %728 = vmatmul.f32.gmra.mxu0 %v654
        %v729 = vpop.f32.mrf.mxu0
        %v730 = vadd.f32 %v627, %v729
        %731 = vmatmul.f32.gmra.mxu0 %v657
        %v732 = vpop.f32.mrf.mxu0
        %v733 = vadd.f32 %v631, %v732
        %734 = vmatmul.f32.gmra.mxu0 %v660
        %v735 = vpop.f32.mrf.mxu0
        %v736 = vadd.f32 %v635, %v735
        %737 = vmatmul.f32.gmra.mxu0 %v663
        %v738 = vpop.f32.mrf.mxu0
        %v739 = vadd.f32 %v639, %v738
        %740 = vmatmul.f32.gmra.mxu0 %v666
        %v741 = vpop.f32.mrf.mxu0
        %v742 = vadd.f32 %v643, %v741
        %743 = vmatmul.f32.gmra.mxu0 %v669
        %v744 = vpop.f32.mrf.mxu0
        %v745 = vadd.f32 %v647, %v744
        %746 = vmatmul.f32.gmra.mxu0 %v672
        %v747 = vpop.f32.mrf.mxu0
        %v748 = vadd.f32 %v651, %v747
        %749 = vdwg.mxu0
        %v750 = vtanh.pop %v692
        %v751 = vtanh.pop %v730
        %v752 = vtanh.pop %v695
        %v753 = vtanh.pop %v733
        %v754 = vtanh.pop %v698
        %v755 = vtanh.pop %v736
        %v756 = vtanh.pop %v701
        %v757 = vtanh.pop %v739
        %v758 = vtanh.pop %v704
        %v759 = vtanh.pop %v742
        %v760 = vtanh.pop %v707
        %v761 = vtanh.pop %v745
        %v762 = vtanh.pop %v710
        %v763 = vtanh.pop %v748
        %764 = vset.pattern.permute.xlu0 5
        %765 = vperm.xlu0 %764, %v204
        %v766 = vpop.permute.xlu0 %765
        %768 = vset.pattern.permute.xlu0 5
        %769 = vperm.xlu0 %768, %v205
        %v770 = vpop.permute.xlu0 %769
        %772 = vset.pattern.permute.xlu0 5
        %773 = vperm.xlu0 %772, %v206
        %v774 = vpop.permute.xlu0 %773
        %776 = vset.pattern.permute.xlu0 5
        %777 = vperm.xlu0 %776, %v207
        %v778 = vpop.permute.xlu0 %777
        %780 = vset.pattern.permute.xlu0 5
        %781 = vperm.xlu0 %780, %v208
        %v782 = vpop.permute.xlu0 %781
        %784 = vset.pattern.permute.xlu0 5
        %785 = vperm.xlu0 %784, %v209
        %v786 = vpop.permute.xlu0 %785
        %788 = vset.pattern.permute.xlu0 5
        %789 = vperm.xlu0 %788, %v210
        %v790 = vpop.permute.xlu0 %789
        %v792 = vmul.f32 %v750, %v766
        %v793 = vmul.f32 %v751, %v766
        %v794 = vmul.f32 %v752, %v770
        %v795 = vmul.f32 %v753, %v770
        %v796 = vmul.f32 %v754, %v774
        %v797 = vmul.f32 %v755, %v774
        %v798 = vmul.f32 %v756, %v778
        %v799 = vmul.f32 %v757, %v778
        %v800 = vmul.f32 %v758, %v782
        %v801 = vmul.f32 %v759, %v782
        %v802 = vmul.f32 %v760, %v786
        %v803 = vmul.f32 %v761, %v786
        %v804 = vmul.f32 %v762, %v790
        %v805 = vmul.f32 %v763, %v790
        %v806 = vadd.f32 %v792, %v794
        %v807 = vadd.f32 %v806, %v796
        %v808 = vadd.f32 %v807, %v798
        %v809 = vadd.f32 %v808, %v800
        %v810 = vadd.f32 %v809, %v802
        %v811 = vadd.f32 %v810, %v804
        %v812 = vrot.slane %v811, 4
        %v813 = vadd.f32 %v811, %v812
        %v814 = vrot.slane %v813, 2
        %v815 = vadd.f32 %v813, %v814
        %v816 = vrot.slane %v815, 1
        %v817 = vadd.f32 %v815, %v816
        %v818 = vadd.f32 %v793, %v795
        %v819 = vadd.f32 %v818, %v797
        %v820 = vadd.f32 %v819, %v799
        %v821 = vadd.f32 %v820, %v801
        %v822 = vadd.f32 %v821, %v803
        %v823 = vadd.f32 %v822, %v805
        %v824 = vrot.slane %v823, 4
        %v825 = vadd.f32 %v823, %v824
        %v826 = vrot.slane %v825, 2
        %v827 = vadd.f32 %v825, %v826
        %v828 = vrot.slane %v827, 1
        %v829 = vadd.f32 %v827, %v828
        %831 = vset.pattern.permute.xlu0 6
        %832 = vperm.xlu0 %831, %v211
        %v833 = vpop.permute.xlu0 %832
        %v835 = vadd.f32 %v817, %v833
        %v836 = vadd.f32 %v829, %v833
        %v839 = vrot.slane %v836, 7
        %vm840 = vcmask 1040384
        %v841 = vsel %vm840, %v835, %v839
        %v843 = vlaneseq
        %vm844 = vcmp.ge.s32.totalorder %v843, 0
        %vm845 = vcmp.lt.s32.totalorder %v843, 256
        %vm846 = vmand %vm844, %vm845
        %847 = vst.msk [vmem:[%s188] sm:$0x3] %vm846, %v841
        %s848 = scalar_lea.vmem %s195, 2
        %v849 = vld [vmem:[%s848] sm:$0x3]
        %v851 = vperm.slane %v849, 0
        %v852 = vperm.slane %v849, 1
        %v855 = vmul.f32 %v239, %v851
        %v856 = vmul.f32 %v239, %v852
        %v857 = vmul.f32 %v244, %v851
        %v858 = vmul.f32 %v244, %v852
        %v859 = vmul.f32 %v249, %v851
        %v860 = vmul.f32 %v249, %v852
        %v861 = vmul.f32 %v254, %v851
        %v862 = vmul.f32 %v254, %v852
        %v863 = vmul.f32 %v259, %v851
        %v864 = vmul.f32 %v259, %v852
        %v865 = vmul.f32 %v264, %v851
        %v866 = vmul.f32 %v264, %v852
        %v867 = vmul.f32 %v269, %v851
        %v868 = vmul.f32 %v269, %v852
        %v869 = vadd.f32 %v855, %v292
        %v870 = vadd.f32 %v856, %v292
        %v871 = vadd.f32 %v857, %v296
        %v872 = vadd.f32 %v858, %v296
        %v873 = vadd.f32 %v859, %v300
        %v874 = vadd.f32 %v860, %v300
        %v875 = vadd.f32 %v861, %v304
        %v876 = vadd.f32 %v862, %v304
        %v877 = vadd.f32 %v863, %v308
        %v878 = vadd.f32 %v864, %v308
        %v879 = vadd.f32 %v865, %v312
        %v880 = vadd.f32 %v866, %v312
        %v881 = vadd.f32 %v867, %v316
        %v882 = vadd.f32 %v868, %v316
        %v883 = vtanh.pop %v869
        %v884 = vtanh.pop %v870
        %v885 = vtanh.pop %v871
        %v886 = vtanh.pop %v872
        %v887 = vtanh.pop %v873
        %v888 = vtanh.pop %v874
        %v889 = vtanh.pop %v875
        %v890 = vtanh.pop %v876
        %v891 = vtanh.pop %v877
        %v892 = vtanh.pop %v878
        %v893 = vtanh.pop %v879
        %v894 = vtanh.pop %v880
        %v895 = vtanh.pop %v881
        %v896 = vtanh.pop %v882
        %897 = vmatpush.msra.mxu0 0.0
        %898 = vmatpush.msra.mxu0 0.0
        %899 = vmatpush.msra.mxu0 0.0
        %900 = vmatpush.msra.mxu0 0.0
        %901 = vmatpush.msra.mxu0 0.0
        %902 = vmatpush.msra.mxu0 0.0
        %903 = vmatpush.msra.mxu0 0.0
        %904 = vmatpush.msra.mxu0 0.0
        %905 = vmatpush.msra.mxu0 0.0
        %906 = vmatpush.msra.mxu0 %v895
        %907 = vmatpush.msra.mxu0 %v893
        %908 = vmatpush.msra.mxu0 %v891
        %909 = vmatpush.msra.mxu0 %v889
        %910 = vmatpush.msra.mxu0 %v887
        %911 = vmatpush.msra.mxu0 %v885
        %912 = vmatpush.msra.mxu0 %v883
        %913 = vmatmul.f32.gmra.mxu0 %v376
        %v914 = vpop.f32.mrf.mxu0
        %v915 = vadd.f32 %v348, %v914
        %916 = vmatmul.f32.gmra.mxu0 %v379
        %v917 = vpop.f32.mrf.mxu0
        %v918 = vadd.f32 %v352, %v917
        %919 = vmatmul.f32.gmra.mxu0 %v382
        %v920 = vpop.f32.mrf.mxu0
        %v921 = vadd.f32 %v356, %v920
        %922 = vmatmul.f32.gmra.mxu0 %v385
        %v923 = vpop.f32.mrf.mxu0
        %v924 = vadd.f32 %v360, %v923
        %925 = vmatmul.f32.gmra.mxu0 %v388
        %v926 = vpop.f32.mrf.mxu0
        %v927 = vadd.f32 %v364, %v926
        %928 = vmatmul.f32.gmra.mxu0 %v391
        %v929 = vpop.f32.mrf.mxu0
        %v930 = vadd.f32 %v368, %v929
        %931 = vmatmul.f32.gmra.mxu0 %v394
        %v932 = vpop.f32.mrf.mxu0
        %v933 = vadd.f32 %v372, %v932
        %934 = vdwg.mxu0
        %935 = vmatpush.msra.mxu0 0.0
        %936 = vmatpush.msra.mxu0 0.0
        %937 = vmatpush.msra.mxu0 0.0
        %938 = vmatpush.msra.mxu0 0.0
        %939 = vmatpush.msra.mxu0 0.0
        %940 = vmatpush.msra.mxu0 0.0
        %941 = vmatpush.msra.mxu0 0.0
        %942 = vmatpush.msra.mxu0 0.0
        %943 = vmatpush.msra.mxu0 0.0
        %944 = vmatpush.msra.mxu0 %v896
        %945 = vmatpush.msra.mxu0 %v894
        %946 = vmatpush.msra.mxu0 %v892
        %947 = vmatpush.msra.mxu0 %v890
        %948 = vmatpush.msra.mxu0 %v888
        %949 = vmatpush.msra.mxu0 %v886
        %950 = vmatpush.msra.mxu0 %v884
        %951 = vmatmul.f32.gmra.mxu0 %v376
        %v952 = vpop.f32.mrf.mxu0
        %v953 = vadd.f32 %v348, %v952
        %954 = vmatmul.f32.gmra.mxu0 %v379
        %v955 = vpop.f32.mrf.mxu0
        %v956 = vadd.f32 %v352, %v955
        %957 = vmatmul.f32.gmra.mxu0 %v382
        %v958 = vpop.f32.mrf.mxu0
        %v959 = vadd.f32 %v356, %v958
        %960 = vmatmul.f32.gmra.mxu0 %v385
        %v961 = vpop.f32.mrf.mxu0
        %v962 = vadd.f32 %v360, %v961
        %963 = vmatmul.f32.gmra.mxu0 %v388
        %v964 = vpop.f32.mrf.mxu0
        %v965 = vadd.f32 %v364, %v964
        %966 = vmatmul.f32.gmra.mxu0 %v391
        %v967 = vpop.f32.mrf.mxu0
        %v968 = vadd.f32 %v368, %v967
        %969 = vmatmul.f32.gmra.mxu0 %v394
        %v970 = vpop.f32.mrf.mxu0
        %v971 = vadd.f32 %v372, %v970
        %972 = vdwg.mxu0
        %v973 = vtanh.pop %v915
        %v974 = vtanh.pop %v953
        %v975 = vtanh.pop %v918
        %v976 = vtanh.pop %v956
        %v977 = vtanh.pop %v921
        %v978 = vtanh.pop %v959
        %v979 = vtanh.pop %v924
        %v980 = vtanh.pop %v962
        %v981 = vtanh.pop %v927
        %v982 = vtanh.pop %v965
        %v983 = vtanh.pop %v930
        %v984 = vtanh.pop %v968
        %v985 = vtanh.pop %v933
        %v986 = vtanh.pop %v971
        %987 = vmatpush.msra.mxu0 0.0
        %988 = vmatpush.msra.mxu0 0.0
        %989 = vmatpush.msra.mxu0 0.0
        %990 = vmatpush.msra.mxu0 0.0
        %991 = vmatpush.msra.mxu0 0.0
        %992 = vmatpush.msra.mxu0 0.0
        %993 = vmatpush.msra.mxu0 0.0
        %994 = vmatpush.msra.mxu0 0.0
        %995 = vmatpush.msra.mxu0 0.0
        %996 = vmatpush.msra.mxu0 %v985
        %997 = vmatpush.msra.mxu0 %v983
        %998 = vmatpush.msra.mxu0 %v981
        %999 = vmatpush.msra.mxu0 %v979
        %1000 = vmatpush.msra.mxu0 %v977
        %1001 = vmatpush.msra.mxu0 %v975
        %1002 = vmatpush.msra.mxu0 %v973
        %1003 = vmatmul.f32.gmra.mxu0 %v515
        %v1004 = vpop.f32.mrf.mxu0
        %v1005 = vadd.f32 %v488, %v1004
        %1006 = vmatmul.f32.gmra.mxu0 %v518
        %v1007 = vpop.f32.mrf.mxu0
        %v1008 = vadd.f32 %v492, %v1007
        %1009 = vmatmul.f32.gmra.mxu0 %v521
        %v1010 = vpop.f32.mrf.mxu0
        %v1011 = vadd.f32 %v496, %v1010
        %1012 = vmatmul.f32.gmra.mxu0 %v524
        %v1013 = vpop.f32.mrf.mxu0
        %v1014 = vadd.f32 %v500, %v1013
        %1015 = vmatmul.f32.gmra.mxu0 %v527
        %v1016 = vpop.f32.mrf.mxu0
        %v1017 = vadd.f32 %v504, %v1016
        %1018 = vmatmul.f32.gmra.mxu0 %v530
        %v1019 = vpop.f32.mrf.mxu0
        %v1020 = vadd.f32 %v508, %v1019
        %1021 = vmatmul.f32.gmra.mxu0 %v533
        %v1022 = vpop.f32.mrf.mxu0
        %v1023 = vadd.f32 %v512, %v1022
        %1024 = vdwg.mxu0
        %1025 = vmatpush.msra.mxu0 0.0
        %1026 = vmatpush.msra.mxu0 0.0
        %1027 = vmatpush.msra.mxu0 0.0
        %1028 = vmatpush.msra.mxu0 0.0
        %1029 = vmatpush.msra.mxu0 0.0
        %1030 = vmatpush.msra.mxu0 0.0
        %1031 = vmatpush.msra.mxu0 0.0
        %1032 = vmatpush.msra.mxu0 0.0
        %1033 = vmatpush.msra.mxu0 0.0
        %1034 = vmatpush.msra.mxu0 %v986
        %1035 = vmatpush.msra.mxu0 %v984
        %1036 = vmatpush.msra.mxu0 %v982
        %1037 = vmatpush.msra.mxu0 %v980
        %1038 = vmatpush.msra.mxu0 %v978
        %1039 = vmatpush.msra.mxu0 %v976
        %1040 = vmatpush.msra.mxu0 %v974
        %1041 = vmatmul.f32.gmra.mxu0 %v515
        %v1042 = vpop.f32.mrf.mxu0
        %v1043 = vadd.f32 %v488, %v1042
        %1044 = vmatmul.f32.gmra.mxu0 %v518
        %v1045 = vpop.f32.mrf.mxu0
        %v1046 = vadd.f32 %v492, %v1045
        %1047 = vmatmul.f32.gmra.mxu0 %v521
        %v1048 = vpop.f32.mrf.mxu0
        %v1049 = vadd.f32 %v496, %v1048
        %1050 = vmatmul.f32.gmra.mxu0 %v524
        %v1051 = vpop.f32.mrf.mxu0
        %v1052 = vadd.f32 %v500, %v1051
        %1053 = vmatmul.f32.gmra.mxu0 %v527
        %v1054 = vpop.f32.mrf.mxu0
        %v1055 = vadd.f32 %v504, %v1054
        %1056 = vmatmul.f32.gmra.mxu0 %v530
        %v1057 = vpop.f32.mrf.mxu0
        %v1058 = vadd.f32 %v508, %v1057
        %1059 = vmatmul.f32.gmra.mxu0 %v533
        %v1060 = vpop.f32.mrf.mxu0
        %v1061 = vadd.f32 %v512, %v1060
        %1062 = vdwg.mxu0
        %v1063 = vtanh.pop %v1005
        %v1064 = vtanh.pop %v1043
        %v1065 = vtanh.pop %v1008
        %v1066 = vtanh.pop %v1046
        %v1067 = vtanh.pop %v1011
        %v1068 = vtanh.pop %v1049
        %v1069 = vtanh.pop %v1014
        %v1070 = vtanh.pop %v1052
        %v1071 = vtanh.pop %v1017
        %v1072 = vtanh.pop %v1055
        %v1073 = vtanh.pop %v1020
        %v1074 = vtanh.pop %v1058
        %v1075 = vtanh.pop %v1023
        %v1076 = vtanh.pop %v1061
        %1077 = vmatpush.msra.mxu0 0.0
        %1078 = vmatpush.msra.mxu0 0.0
        %1079 = vmatpush.msra.mxu0 0.0
        %1080 = vmatpush.msra.mxu0 0.0
        %1081 = vmatpush.msra.mxu0 0.0
        %1082 = vmatpush.msra.mxu0 0.0
        %1083 = vmatpush.msra.mxu0 0.0
        %1084 = vmatpush.msra.mxu0 0.0
        %1085 = vmatpush.msra.mxu0 0.0
        %1086 = vmatpush.msra.mxu0 %v1075
        %1087 = vmatpush.msra.mxu0 %v1073
        %1088 = vmatpush.msra.mxu0 %v1071
        %1089 = vmatpush.msra.mxu0 %v1069
        %1090 = vmatpush.msra.mxu0 %v1067
        %1091 = vmatpush.msra.mxu0 %v1065
        %1092 = vmatpush.msra.mxu0 %v1063
        %1093 = vmatmul.f32.gmra.mxu0 %v654
        %v1094 = vpop.f32.mrf.mxu0
        %v1095 = vadd.f32 %v627, %v1094
        %1096 = vmatmul.f32.gmra.mxu0 %v657
        %v1097 = vpop.f32.mrf.mxu0
        %v1098 = vadd.f32 %v631, %v1097
        %1099 = vmatmul.f32.gmra.mxu0 %v660
        %v1100 = vpop.f32.mrf.mxu0
        %v1101 = vadd.f32 %v635, %v1100
        %1102 = vmatmul.f32.gmra.mxu0 %v663
        %v1103 = vpop.f32.mrf.mxu0
        %v1104 = vadd.f32 %v639, %v1103
        %1105 = vmatmul.f32.gmra.mxu0 %v666
        %v1106 = vpop.f32.mrf.mxu0
        %v1107 = vadd.f32 %v643, %v1106
        %1108 = vmatmul.f32.gmra.mxu0 %v669
        %v1109 = vpop.f32.mrf.mxu0
        %v1110 = vadd.f32 %v647, %v1109
        %1111 = vmatmul.f32.gmra.mxu0 %v672
        %v1112 = vpop.f32.mrf.mxu0
        %v1113 = vadd.f32 %v651, %v1112
        %1114 = vdwg.mxu0
        %1115 = vmatpush.msra.mxu0 0.0
        %1116 = vmatpush.msra.mxu0 0.0
        %1117 = vmatpush.msra.mxu0 0.0
        %1118 = vmatpush.msra.mxu0 0.0
        %1119 = vmatpush.msra.mxu0 0.0
        %1120 = vmatpush.msra.mxu0 0.0
        %1121 = vmatpush.msra.mxu0 0.0
        %1122 = vmatpush.msra.mxu0 0.0
        %1123 = vmatpush.msra.mxu0 0.0
        %1124 = vmatpush.msra.mxu0 %v1076
        %1125 = vmatpush.msra.mxu0 %v1074
        %1126 = vmatpush.msra.mxu0 %v1072
        %1127 = vmatpush.msra.mxu0 %v1070
        %1128 = vmatpush.msra.mxu0 %v1068
        %1129 = vmatpush.msra.mxu0 %v1066
        %1130 = vmatpush.msra.mxu0 %v1064
        %1131 = vmatmul.f32.gmra.mxu0 %v654
        %v1132 = vpop.f32.mrf.mxu0
        %v1133 = vadd.f32 %v627, %v1132
        %1134 = vmatmul.f32.gmra.mxu0 %v657
        %v1135 = vpop.f32.mrf.mxu0
        %v1136 = vadd.f32 %v631, %v1135
        %1137 = vmatmul.f32.gmra.mxu0 %v660
        %v1138 = vpop.f32.mrf.mxu0
        %v1139 = vadd.f32 %v635, %v1138
        %1140 = vmatmul.f32.gmra.mxu0 %v663
        %v1141 = vpop.f32.mrf.mxu0
        %v1142 = vadd.f32 %v639, %v1141
        %1143 = vmatmul.f32.gmra.mxu0 %v666
        %v1144 = vpop.f32.mrf.mxu0
        %v1145 = vadd.f32 %v643, %v1144
        %1146 = vmatmul.f32.gmra.mxu0 %v669
        %v1147 = vpop.f32.mrf.mxu0
        %v1148 = vadd.f32 %v647, %v1147
        %1149 = vmatmul.f32.gmra.mxu0 %v672
        %v1150 = vpop.f32.mrf.mxu0
        %v1151 = vadd.f32 %v651, %v1150
        %1152 = vdwg.mxu0
        %v1153 = vtanh.pop %v1095
        %v1154 = vtanh.pop %v1133
        %v1155 = vtanh.pop %v1098
        %v1156 = vtanh.pop %v1136
        %v1157 = vtanh.pop %v1101
        %v1158 = vtanh.pop %v1139
        %v1159 = vtanh.pop %v1104
        %v1160 = vtanh.pop %v1142
        %v1161 = vtanh.pop %v1107
        %v1162 = vtanh.pop %v1145
        %v1163 = vtanh.pop %v1110
        %v1164 = vtanh.pop %v1148
        %v1165 = vtanh.pop %v1113
        %v1166 = vtanh.pop %v1151
        %v1167 = vmul.f32 %v1153, %v766
        %v1168 = vmul.f32 %v1154, %v766
        %v1169 = vmul.f32 %v1155, %v770
        %v1170 = vmul.f32 %v1156, %v770
        %v1171 = vmul.f32 %v1157, %v774
        %v1172 = vmul.f32 %v1158, %v774
        %v1173 = vmul.f32 %v1159, %v778
        %v1174 = vmul.f32 %v1160, %v778
        %v1175 = vmul.f32 %v1161, %v782
        %v1176 = vmul.f32 %v1162, %v782
        %v1177 = vmul.f32 %v1163, %v786
        %v1178 = vmul.f32 %v1164, %v786
        %v1179 = vmul.f32 %v1165, %v790
        %v1180 = vmul.f32 %v1166, %v790
        %v1181 = vadd.f32 %v1167, %v1169
        %v1182 = vadd.f32 %v1181, %v1171
        %v1183 = vadd.f32 %v1182, %v1173
        %v1184 = vadd.f32 %v1183, %v1175
        %v1185 = vadd.f32 %v1184, %v1177
        %v1186 = vadd.f32 %v1185, %v1179
        %v1187 = vrot.slane %v1186, 4
        %v1188 = vadd.f32 %v1186, %v1187
        %v1189 = vrot.slane %v1188, 2
        %v1190 = vadd.f32 %v1188, %v1189
        %v1191 = vrot.slane %v1190, 1
        %v1192 = vadd.f32 %v1190, %v1191
        %v1193 = vadd.f32 %v1168, %v1170
        %v1194 = vadd.f32 %v1193, %v1172
        %v1195 = vadd.f32 %v1194, %v1174
        %v1196 = vadd.f32 %v1195, %v1176
        %v1197 = vadd.f32 %v1196, %v1178
        %v1198 = vadd.f32 %v1197, %v1180
        %v1199 = vrot.slane %v1198, 4
        %v1200 = vadd.f32 %v1198, %v1199
        %v1201 = vrot.slane %v1200, 2
        %v1202 = vadd.f32 %v1200, %v1201
        %v1203 = vrot.slane %v1202, 1
        %v1204 = vadd.f32 %v1202, %v1203
        %v1205 = vadd.f32 %v1192, %v833
        %v1206 = vadd.f32 %v1204, %v833
        %v1209 = vrot.slane %v1206, 7
        %v1210 = vsel %vm840, %v1205, %v1209
        %s1212 = scalar_lea.vmem %s188, 2 [#allocation5]
        %1213 = vst.msk [vmem:[%s1212] sm:$0x3] %vm846, %v1210
        %s1214 = sand.u32 %s94, 1
        %s1215 = scalar_lea.sflag [#allocation4], %s1214
        %s1216 = sand.u32 %s94, 1
        %s1217 = smul.addr %s1216, 4
        %s1218 = scalar_lea.vmem [#allocation5], %s1217
        // Predicated region
        $region37: #{tpu_custom_call.1} parent=31 // pred_check
          %p1219 = pneg %p104
        $region38: #{tpu_custom_call.1} parent=31 // pred_check_branch
          %1221 = sbr.rel (%p1219) target = $region40
        $region39: #{tpu_custom_call.1} parent=31 // pred_region
          %s1222 = smul.u32 4, %s18
          %s1223 = ssub.s32 5, %s1222
          %p1224 = scmp.lt.s32.totalorder %s1223, 4
          %s1225 = scalar_select %p1224, %s1223, 4
          %s1226 = ssub.s32 4, %s1225
          %s1227 = sshll.u32 %s1226, 4
          %1228 = vsyncadd %s1215, %s1227
          %p1229 = scmp.ne.s32.totalorder 0, %s1225
          %s1230 = scalar_lea.hbm %s3, %s1222
          %s1231 = sshll.u32 %s1225, 4
          %s1232 = sshll.u32 %s1218, 4
          %s1233 = int_to_ptr.vmem [resolvable:$true] %s1232
          %s1234 = sshll.u32 %s1230, 4
          %s1235 = int_to_ptr.hbm [resolvable:$true] %s1234
          %1237 = dma.vmem_to_hbm [thread:$0]  (%p1229), %s1233, %s1231, %s1235, %s1215
        $region40: #{tpu_custom_call.1} parent=31 // pred_fallthru
          _
      $region32: #{tpu_custom_call.1} parent=5 // pred_fallthru
        _
      %p1238 = scmp.le.s32.totalorder 2, %s13
      // Predicated region
      $region41: #{tpu_custom_call.1} parent=5 // pred_check
        %p1239 = pneg %p1238
      $region42: #{tpu_custom_call.1} parent=5 // pred_check_branch
        %1241 = sbr.rel (%p1239) target = $region44
      $region43: #{tpu_custom_call.1} parent=5 // pred_region
        %s1242 = ssub.s32 %s13, 2
        // Predicated region
        $region45: #{tpu_custom_call.1} parent=43 // pred_check
          %p1243 = pneg %p110
        $region46: #{tpu_custom_call.1} parent=43 // pred_check_branch
          %1245 = sbr.rel (%p1243) target = $region48
        $region47: #{tpu_custom_call.1} parent=43 // pred_region
          %s1246 = sand.u32 %s95, 1
          %s1247 = scalar_lea.sflag [#allocation4], %s1246
          %s1248 = sand.u32 %s95, 1
          %s1249 = smul.addr %s1248, 4
          %s1250 = scalar_lea.vmem [#allocation5], %s1249
          %1252 = dma.done %s1247, 64
        $region48: #{tpu_custom_call.1} parent=43 // pred_fallthru
          _
      $region44: #{tpu_custom_call.1} parent=5 // pred_fallthru
        _
    $region6: #{tpu_custom_call.1} parent=1 // loop_footer
      %s17 = sadd.s32 1, %s13
    $region7: #{tpu_custom_call.1} parent=1 // loop_footer_branch
      %12 = sbr.rel target = $region3
    $region8: #{tpu_custom_call.1} parent=1 // loop_exit
      _
    %1253 = vsyncpa [#allocation3], 1
    %s1254 = scalar_lea.sflag [#allocation3], 1
    %1255 = vsyncpa %s1254, 1
    %1256 = vsyncpa [#allocation4], 1
    %s1257 = scalar_lea.sflag [#allocation4], 1
    %1258 = vsyncpa %s1257, 1

</llo_original>
